<compile_context>
chip_gen: v7x
topology: tpu7x:2x2x1
jax: 0.10.0
libtpu: 0.0.40
codegen_flags: <defaults>
</compile_context>

<pallas_src>
import functools

import jax
import jax.numpy as jnp
from jax import lax
from jax.experimental import pallas as pl
from jax.experimental.pallas import tpu as pltpu


# ---------------------------------------------------------------------------
# Fused kernel: QKV projection + causal attention (all heads) + concat + proj
# Grid: (B, T // block_q)
# ---------------------------------------------------------------------------
def _mha_fused_kernel(x_ref, wqkv_ref, wproj_ref, bias_ref, o_ref, *,
                      n_heads, head_size, scale, block_q, seq_len, mxu_dtype):
    C = n_heads * head_size

    wqkv = wqkv_ref[...].astype(mxu_dtype)          # (C, 3C)  [Wq_all|Wk_all|Wv_all]

    qi = pl.program_id(1)
    q_start = pl.multiple_of(qi * block_q, block_q)

    if block_q == seq_len:
        # Single query tile: one fused MXU matmul for Q, K and V of all heads.
        x = x_ref[0].astype(mxu_dtype)              # (T, C)
        qkv = jnp.dot(x, wqkv, preferred_element_type=jnp.float32)   # (T, 3C) f32
        q_all = qkv[:, :C]
        k_all = qkv[:, C:2 * C]
        v_all = qkv[:, 2 * C:]
    else:
        # Query-tiled path: Q from the query rows, K/V from the full sequence.
        x_full = x_ref[0].astype(mxu_dtype)                          # (T, C)
        xq = x_ref[0, pl.ds(q_start, block_q), :].astype(mxu_dtype)  # (block_q, C)
        q_all = jnp.dot(xq, wqkv[:, :C], preferred_element_type=jnp.float32)
        kv = jnp.dot(x_full, wqkv[:, C:], preferred_element_type=jnp.float32)
        k_all = kv[:, :C]
        v_all = kv[:, C:]

    # Scale q once (O(T*C)) instead of scaling the (T, T) score matrix.
    q_bf = (q_all * scale).astype(mxu_dtype)        # (block_q, C)
    k_bf = k_all.astype(mxu_dtype)                  # (T, C)
    v_bf = v_all.astype(mxu_dtype)                  # (T, C)

    # Causal mask (hoisted out of the per-head loop).
    row = q_start + lax.broadcasted_iota(jnp.int32, (block_q, seq_len), 0)
    col = lax.broadcasted_iota(jnp.int32, (block_q, seq_len), 1)
    causal = col <= row

    head_outs = []
    for h in range(n_heads):                         # static unroll (n_heads small)
        sl = slice(h * head_size, (h + 1) * head_size)
        # Contract the head dims directly -> no explicit transpose of K.
        s = lax.dot_general(q_bf[:, sl], k_bf[:, sl],
                            dimension_numbers=(((1,), (1,)), ((), ())),
                            preferred_element_type=jnp.float32)      # (block_q, T)
        s = jnp.where(causal, s, -jnp.inf)
        # Numerically-stable softmax, kept in f32 (VPU/EUP path).
        m = jnp.max(s, axis=-1, keepdims=True)
        p = jnp.exp(s - m)
        denom = jnp.sum(p, axis=-1, keepdims=True)
        p = p * pl.reciprocal(denom, approx=True)    # EUP reciprocal, no divide
        head_outs.append(
            jnp.dot(p.astype(mxu_dtype), v_bf[:, sl],
                    preferred_element_type=jnp.float32))             # (block_q, H)

    cat = jnp.concatenate(head_outs, axis=-1)        # (block_q, C)

    # Output projection fused into the same kernel: y = cat @ Wp^T + b
    wproj = wproj_ref[...].astype(mxu_dtype)         # (C, C) already transposed
    y = jnp.dot(cat.astype(mxu_dtype), wproj,
                preferred_element_type=jnp.float32) + bias_ref[...]
    o_ref[0] = y.astype(o_ref.dtype)


# ---------------------------------------------------------------------------
# Wrapper: weight stacking + pallas_call
# ---------------------------------------------------------------------------
def multi_head_attn(x, params, *, block_q=None, mxu_dtype=jnp.bfloat16):
    """x: (B, T, C); params: per-head wq/wk/wv (n_heads, C, H), wp_t (C, C), bp (1, C)."""
    B, T, C = x.shape
    wq, wk, wv = params["wq"], params["wk"], params["wv"]
    n_heads, _, H = wq.shape
    assert n_heads * H == C, "n_heads * head_size must equal n_embeddings"

    # Stack per-head weights into one (C, 3C) matrix: [Wq_all | Wk_all | Wv_all].
    def _stack(w):  # (n_heads, C, H) -> (C, n_heads*H)
        return jnp.transpose(w, (1, 0, 2)).reshape(C, n_heads * H)

    w_qkv = jnp.concatenate([_stack(wq), _stack(wk), _stack(wv)], axis=1)  # (C, 3C)

    if block_q is None:
        block_q = T if T <= 128 else 128
    assert T % block_q == 0, "seq_len must be divisible by block_q"
    num_q = T // block_q
    scale = float(C) ** (-0.5)   # NOTE: PyTorch module scales by C**-0.5 (embed dim)

    kernel = functools.partial(
        _mha_fused_kernel, n_heads=n_heads, head_size=H, scale=scale,
        block_q=block_q, seq_len=T, mxu_dtype=mxu_dtype)

    return pl.pallas_call(
        kernel,
        out_shape=jax.ShapeDtypeStruct((B, T, C), jnp.float32),
        grid_spec=pltpu.PrefetchScalarGridSpec(
            num_scalar_prefetch=0,
            grid=(B, num_q),
            in_specs=[
                pl.BlockSpec((1, T, C), lambda b, qi: (b, 0, 0)),       # x (full seq)
                pl.BlockSpec((C, 3 * C), lambda b, qi: (0, 0)),         # stacked QKV W
                pl.BlockSpec((C, C), lambda b, qi: (0, 0)),             # proj W (C_in,C_out)
                pl.BlockSpec((1, C), lambda b, qi: (0, 0)),             # proj bias
            ],
            out_specs=pl.BlockSpec((1, block_q, C), lambda b, qi: (b, qi, 0)),
        ),
        compiler_params=pltpu.CompilerParams(
            dimension_semantics=("parallel", "parallel")),
    )(x, w_qkv, params["wp_t"], params["bp"])


# ---------------------------------------------------------------------------
# Deterministic parameter init (shapes per MultiHeadAttn.__init__)
# ---------------------------------------------------------------------------
def init_params(key, n_heads, head_size, n_embeddings):
    ks = jax.random.split(key, 5)
    s = 0.02
    wq = s * jax.random.normal(ks[0], (n_heads, n_embeddings, head_size), jnp.float32)
    wk = s * jax.random.normal(ks[1], (n_heads, n_embeddings, head_size), jnp.float32)
    wv = s * jax.random.normal(ks[2], (n_heads, n_embeddings, head_size), jnp.float32)
    wp = s * jax.random.normal(ks[3], (n_embeddings, n_embeddings), jnp.float32)  # torch (out,in)
    bp = s * jax.random.normal(ks[4], (n_embeddings,), jnp.float32)
    return {
        "wq": wq, "wk": wk, "wv": wv,
        "wp_t": wp.T,                      # (C_in, C_out) so y = x @ wp_t
        "bp": bp.reshape(1, n_embeddings),
    }


# Pure-JAX (f32) reference for sanity checking
def _ref_forward(x, params):
    B, T, C = x.shape
    scale = C ** (-0.5)
    outs = []
    n_heads = params["wq"].shape[0]
    mask = jnp.tril(jnp.ones((T, T), bool))
    for h in range(n_heads):
        q = x @ params["wq"][h]
        k = x @ params["wk"][h]
        v = x @ params["wv"][h]
        wei = (q @ jnp.swapaxes(k, -1, -2)) * scale
        wei = jnp.where(mask, wei, -jnp.inf)
        wei = jax.nn.softmax(wei, axis=-1)
        outs.append(wei @ v)
    cat = jnp.concatenate(outs, axis=-1)
    return cat @ params["wp_t"] + params["bp"]


if __name__ == "__main__":
    # small, module-consistent shapes
    B, T = 2, 8                         # batch, context_size (seq len)
    n_heads, head_size = 4, 8
    n_embeddings = n_heads * head_size  # 32

    key = jax.random.PRNGKey(0)
    kx, kp = jax.random.split(key)
    x = jax.random.normal(kx, (B, T, n_embeddings), jnp.float32)
    params = init_params(kp, n_heads, head_size, n_embeddings)

    out = multi_head_attn(x, params)
    out = jax.block_until_ready(out)

    ref = _ref_forward(x, params)
    assert out.shape == (B, T, n_embeddings)
    # bf16 MXU operands + approx reciprocal -> compare against f32 reference
    # with a tolerance that comfortably covers the cast error at these scales.
    assert jnp.allclose(out, ref, atol=1e-2, rtol=1e-2)

    print("KERNEL_OK")
</pallas_src>

<mosaic_0001>
module attributes {stable_mosaic.version = 11 : i64} {
  func.func @_mha_fused_kernel(%arg0: i32, %arg1: i32, %arg2: memref<1x8x32xf32, #tpu.memory_space<vmem>>, %arg3: memref<32x96xf32, #tpu.memory_space<vmem>>, %arg4: memref<32x32xf32, #tpu.memory_space<vmem>>, %arg5: memref<1x32xf32, #tpu.memory_space<vmem>>, %arg6: memref<1x8x32xf32, #tpu.memory_space<vmem>>) attributes {dimension_semantics = [#tpu.dimension_semantics<parallel>, #tpu.dimension_semantics<parallel>], iteration_bounds = array<i64: 2, 1>, scalar_prefetch = 0 : i64, scratch_operands = 0 : i64, tpu.core_type = #tpu.core_type<tc>, window_params = [{transform_indices = @transform_0, window_bounds = array<i64: 1, 8, 32>}, {pipeline_mode = #tpu.pipeline_mode<synchronous>, transform_indices = @transform_1, window_bounds = array<i64: 32, 96>}, {pipeline_mode = #tpu.pipeline_mode<synchronous>, transform_indices = @transform_2, window_bounds = array<i64: 32, 32>}, {pipeline_mode = #tpu.pipeline_mode<synchronous>, transform_indices = @transform_3, window_bounds = array<i64: 1, 32>}, {transform_indices = @transform_4, window_bounds = array<i64: 1, 8, 32>}]} {
    %c0 = arith.constant 0 : index
    %c0_0 = arith.constant 0 : index
    %0 = vector.load %arg3[%c0, %c0_0] : memref<32x96xf32, #tpu.memory_space<vmem>>, vector<32x96xf32>
    %1 = arith.truncf %0 : vector<32x96xf32> to vector<32x96xbf16>
    %c8_i32 = arith.constant 8 : i32
    %2 = arith.muli %arg1, %c8_i32 : i32
    %3 = tpu.assume_multiple %2, 8 : i32
    %c0_1 = arith.constant 0 : index
    %c0_2 = arith.constant 0 : index
    %c0_3 = arith.constant 0 : index
    %4 = vector.load %arg2[%c0_1, %c0_2, %c0_3] : memref<1x8x32xf32, #tpu.memory_space<vmem>>, vector<1x8x32xf32>
    %5 = vector.shape_cast %4 : vector<1x8x32xf32> to vector<8x32xf32>
    %6 = arith.truncf %5 : vector<8x32xf32> to vector<8x32xbf16>
    %cst = arith.constant dense<0.000000e+00> : vector<8x96xf32>
    %7 = tpu.matmul %6, %1, %cst {dimension_numbers = #tpu.dot_dimension_numbers<[1], [0], [0], [1], [0, 0, 1, 1], [], []>} : vector<8x32xbf16>, vector<32x96xbf16>, vector<8x96xf32> -> vector<8x96xf32>
    %8 = vector.extract_strided_slice %7 {offsets = [0, 0], sizes = [8, 32], strides = [1, 1]} : vector<8x96xf32> to vector<8x32xf32>
    %9 = vector.extract_strided_slice %7 {offsets = [0, 32], sizes = [8, 32], strides = [1, 1]} : vector<8x96xf32> to vector<8x32xf32>
    %10 = vector.extract_strided_slice %7 {offsets = [0, 64], sizes = [8, 32], strides = [1, 1]} : vector<8x96xf32> to vector<8x32xf32>
    %cst_4 = arith.constant 0.176776692 : f32
    %11 = vector.broadcast %cst_4 : f32 to vector<8x32xf32>
    %12 = arith.mulf %8, %11 : vector<8x32xf32>
    %13 = arith.truncf %12 : vector<8x32xf32> to vector<8x32xbf16>
    %14 = arith.truncf %9 : vector<8x32xf32> to vector<8x32xbf16>
    %15 = arith.truncf %10 : vector<8x32xf32> to vector<8x32xbf16>
    %16 = tpu.iota {dimensions = array<i32: 0>} : vector<8x8xi32>
    %17 = vector.broadcast %3 : i32 to vector<8x8xi32>
    %18 = arith.addi %17, %16 : vector<8x8xi32>
    %19 = tpu.iota {dimensions = array<i32: 1>} : vector<8x8xi32>
    %20 = arith.cmpi sle, %19, %18 : vector<8x8xi32>
    %21 = vector.extract_strided_slice %13 {offsets = [0, 0], sizes = [8, 8], strides = [1, 1]} : vector<8x32xbf16> to vector<8x8xbf16>
    %22 = vector.extract_strided_slice %14 {offsets = [0, 0], sizes = [8, 8], strides = [1, 1]} : vector<8x32xbf16> to vector<8x8xbf16>
    %cst_5 = arith.constant dense<0.000000e+00> : vector<8x8xf32>
    %23 = tpu.matmul %21, %22, %cst_5 {dimension_numbers = #tpu.dot_dimension_numbers<[1], [1], [0], [0], [0, 0, 1, 0], [], []>} : vector<8x8xbf16>, vector<8x8xbf16>, vector<8x8xf32> -> vector<8x8xf32>
    %cst_6 = arith.constant 0xFF800000 : f32
    %24 = vector.broadcast %cst_6 : f32 to vector<8x8xf32>
    %25 = arith.select %20, %23, %24 : vector<8x8xi1>, vector<8x8xf32>
    %cst_7 = arith.constant dense<0xFF800000> : vector<8xf32>
    %26 = vector.multi_reduction <maximumf>, %25, %cst_7 [1] : vector<8x8xf32> to vector<8xf32>
    %27 = vector.shape_cast %26 : vector<8xf32> to vector<8x1xf32>
    %28 = vector.broadcast %27 : vector<8x1xf32> to vector<8x8xf32>
    %29 = arith.subf %25, %28 : vector<8x8xf32>
    %30 = math.exp %29 : vector<8x8xf32>
    %cst_8 = arith.constant dense<0.000000e+00> : vector<8xf32>
    %31 = vector.multi_reduction <add>, %30, %cst_8 [1] : vector<8x8xf32> to vector<8xf32>
    %32 = vector.shape_cast %31 : vector<8xf32> to vector<8x1xf32>
    %33 = tpu.reciprocal %32 {approx = true} : vector<8x1xf32> -> vector<8x1xf32>
    %34 = vector.broadcast %33 : vector<8x1xf32> to vector<8x8xf32>
    %35 = arith.mulf %30, %34 : vector<8x8xf32>
    %36 = arith.truncf %35 : vector<8x8xf32> to vector<8x8xbf16>
    %37 = vector.extract_strided_slice %15 {offsets = [0, 0], sizes = [8, 8], strides = [1, 1]} : vector<8x32xbf16> to vector<8x8xbf16>
    %cst_9 = arith.constant dense<0.000000e+00> : vector<8x8xf32>
    %38 = tpu.matmul %36, %37, %cst_9 {dimension_numbers = #tpu.dot_dimension_numbers<[1], [0], [0], [1], [0, 0, 1, 1], [], []>} : vector<8x8xbf16>, vector<8x8xbf16>, vector<8x8xf32> -> vector<8x8xf32>
    %39 = vector.extract_strided_slice %13 {offsets = [0, 8], sizes = [8, 8], strides = [1, 1]} : vector<8x32xbf16> to vector<8x8xbf16>
    %40 = vector.extract_strided_slice %14 {offsets = [0, 8], sizes = [8, 8], strides = [1, 1]} : vector<8x32xbf16> to vector<8x8xbf16>
    %cst_10 = arith.constant dense<0.000000e+00> : vector<8x8xf32>
    %41 = tpu.matmul %39, %40, %cst_10 {dimension_numbers = #tpu.dot_dimension_numbers<[1], [1], [0], [0], [0, 0, 1, 0], [], []>} : vector<8x8xbf16>, vector<8x8xbf16>, vector<8x8xf32> -> vector<8x8xf32>
    %cst_11 = arith.constant 0xFF800000 : f32
    %42 = vector.broadcast %cst_11 : f32 to vector<8x8xf32>
    %43 = arith.select %20, %41, %42 : vector<8x8xi1>, vector<8x8xf32>
    %cst_12 = arith.constant dense<0xFF800000> : vector<8xf32>
    %44 = vector.multi_reduction <maximumf>, %43, %cst_12 [1] : vector<8x8xf32> to vector<8xf32>
    %45 = vector.shape_cast %44 : vector<8xf32> to vector<8x1xf32>
    %46 = vector.broadcast %45 : vector<8x1xf32> to vector<8x8xf32>
    %47 = arith.subf %43, %46 : vector<8x8xf32>
    %48 = math.exp %47 : vector<8x8xf32>
    %cst_13 = arith.constant dense<0.000000e+00> : vector<8xf32>
    %49 = vector.multi_reduction <add>, %48, %cst_13 [1] : vector<8x8xf32> to vector<8xf32>
    %50 = vector.shape_cast %49 : vector<8xf32> to vector<8x1xf32>
    %51 = tpu.reciprocal %50 {approx = true} : vector<8x1xf32> -> vector<8x1xf32>
    %52 = vector.broadcast %51 : vector<8x1xf32> to vector<8x8xf32>
    %53 = arith.mulf %48, %52 : vector<8x8xf32>
    %54 = arith.truncf %53 : vector<8x8xf32> to vector<8x8xbf16>
    %55 = vector.extract_strided_slice %15 {offsets = [0, 8], sizes = [8, 8], strides = [1, 1]} : vector<8x32xbf16> to vector<8x8xbf16>
    %cst_14 = arith.constant dense<0.000000e+00> : vector<8x8xf32>
    %56 = tpu.matmul %54, %55, %cst_14 {dimension_numbers = #tpu.dot_dimension_numbers<[1], [0], [0], [1], [0, 0, 1, 1], [], []>} : vector<8x8xbf16>, vector<8x8xbf16>, vector<8x8xf32> -> vector<8x8xf32>
    %57 = vector.extract_strided_slice %13 {offsets = [0, 16], sizes = [8, 8], strides = [1, 1]} : vector<8x32xbf16> to vector<8x8xbf16>
    %58 = vector.extract_strided_slice %14 {offsets = [0, 16], sizes = [8, 8], strides = [1, 1]} : vector<8x32xbf16> to vector<8x8xbf16>
    %cst_15 = arith.constant dense<0.000000e+00> : vector<8x8xf32>
    %59 = tpu.matmul %57, %58, %cst_15 {dimension_numbers = #tpu.dot_dimension_numbers<[1], [1], [0], [0], [0, 0, 1, 0], [], []>} : vector<8x8xbf16>, vector<8x8xbf16>, vector<8x8xf32> -> vector<8x8xf32>
    %cst_16 = arith.constant 0xFF800000 : f32
    %60 = vector.broadcast %cst_16 : f32 to vector<8x8xf32>
    %61 = arith.select %20, %59, %60 : vector<8x8xi1>, vector<8x8xf32>
    %cst_17 = arith.constant dense<0xFF800000> : vector<8xf32>
    %62 = vector.multi_reduction <maximumf>, %61, %cst_17 [1] : vector<8x8xf32> to vector<8xf32>
    %63 = vector.shape_cast %62 : vector<8xf32> to vector<8x1xf32>
    %64 = vector.broadcast %63 : vector<8x1xf32> to vector<8x8xf32>
    %65 = arith.subf %61, %64 : vector<8x8xf32>
    %66 = math.exp %65 : vector<8x8xf32>
    %cst_18 = arith.constant dense<0.000000e+00> : vector<8xf32>
    %67 = vector.multi_reduction <add>, %66, %cst_18 [1] : vector<8x8xf32> to vector<8xf32>
    %68 = vector.shape_cast %67 : vector<8xf32> to vector<8x1xf32>
    %69 = tpu.reciprocal %68 {approx = true} : vector<8x1xf32> -> vector<8x1xf32>
    %70 = vector.broadcast %69 : vector<8x1xf32> to vector<8x8xf32>
    %71 = arith.mulf %66, %70 : vector<8x8xf32>
    %72 = arith.truncf %71 : vector<8x8xf32> to vector<8x8xbf16>
    %73 = vector.extract_strided_slice %15 {offsets = [0, 16], sizes = [8, 8], strides = [1, 1]} : vector<8x32xbf16> to vector<8x8xbf16>
    %cst_19 = arith.constant dense<0.000000e+00> : vector<8x8xf32>
    %74 = tpu.matmul %72, %73, %cst_19 {dimension_numbers = #tpu.dot_dimension_numbers<[1], [0], [0], [1], [0, 0, 1, 1], [], []>} : vector<8x8xbf16>, vector<8x8xbf16>, vector<8x8xf32> -> vector<8x8xf32>
    %75 = vector.extract_strided_slice %13 {offsets = [0, 24], sizes = [8, 8], strides = [1, 1]} : vector<8x32xbf16> to vector<8x8xbf16>
    %76 = vector.extract_strided_slice %14 {offsets = [0, 24], sizes = [8, 8], strides = [1, 1]} : vector<8x32xbf16> to vector<8x8xbf16>
    %cst_20 = arith.constant dense<0.000000e+00> : vector<8x8xf32>
    %77 = tpu.matmul %75, %76, %cst_20 {dimension_numbers = #tpu.dot_dimension_numbers<[1], [1], [0], [0], [0, 0, 1, 0], [], []>} : vector<8x8xbf16>, vector<8x8xbf16>, vector<8x8xf32> -> vector<8x8xf32>
    %cst_21 = arith.constant 0xFF800000 : f32
    %78 = vector.broadcast %cst_21 : f32 to vector<8x8xf32>
    %79 = arith.select %20, %77, %78 : vector<8x8xi1>, vector<8x8xf32>
    %cst_22 = arith.constant dense<0xFF800000> : vector<8xf32>
    %80 = vector.multi_reduction <maximumf>, %79, %cst_22 [1] : vector<8x8xf32> to vector<8xf32>
    %81 = vector.shape_cast %80 : vector<8xf32> to vector<8x1xf32>
    %82 = vector.broadcast %81 : vector<8x1xf32> to vector<8x8xf32>
    %83 = arith.subf %79, %82 : vector<8x8xf32>
    %84 = math.exp %83 : vector<8x8xf32>
    %cst_23 = arith.constant dense<0.000000e+00> : vector<8xf32>
    %85 = vector.multi_reduction <add>, %84, %cst_23 [1] : vector<8x8xf32> to vector<8xf32>
    %86 = vector.shape_cast %85 : vector<8xf32> to vector<8x1xf32>
    %87 = tpu.reciprocal %86 {approx = true} : vector<8x1xf32> -> vector<8x1xf32>
    %88 = vector.broadcast %87 : vector<8x1xf32> to vector<8x8xf32>
    %89 = arith.mulf %84, %88 : vector<8x8xf32>
    %90 = arith.truncf %89 : vector<8x8xf32> to vector<8x8xbf16>
    %91 = vector.extract_strided_slice %15 {offsets = [0, 24], sizes = [8, 8], strides = [1, 1]} : vector<8x32xbf16> to vector<8x8xbf16>
    %cst_24 = arith.constant dense<0.000000e+00> : vector<8x8xf32>
    %92 = tpu.matmul %90, %91, %cst_24 {dimension_numbers = #tpu.dot_dimension_numbers<[1], [0], [0], [1], [0, 0, 1, 1], [], []>} : vector<8x8xbf16>, vector<8x8xbf16>, vector<8x8xf32> -> vector<8x8xf32>
    %93 = tpu.concatenate %38, %56, %74, %92 in 1 : vector<8x8xf32>, vector<8x8xf32>, vector<8x8xf32>, vector<8x8xf32> -> vector<8x32xf32>
    %c0_25 = arith.constant 0 : index
    %c0_26 = arith.constant 0 : index
    %94 = vector.load %arg4[%c0_25, %c0_26] : memref<32x32xf32, #tpu.memory_space<vmem>>, vector<32x32xf32>
    %95 = arith.truncf %94 : vector<32x32xf32> to vector<32x32xbf16>
    %96 = arith.truncf %93 : vector<8x32xf32> to vector<8x32xbf16>
    %cst_27 = arith.constant dense<0.000000e+00> : vector<8x32xf32>
    %97 = tpu.matmul %96, %95, %cst_27 {dimension_numbers = #tpu.dot_dimension_numbers<[1], [0], [0], [1], [0, 0, 1, 1], [], []>} : vector<8x32xbf16>, vector<32x32xbf16>, vector<8x32xf32> -> vector<8x32xf32>
    %c0_28 = arith.constant 0 : index
    %c0_29 = arith.constant 0 : index
    %98 = vector.load %arg5[%c0_28, %c0_29] : memref<1x32xf32, #tpu.memory_space<vmem>>, vector<1x32xf32>
    %99 = vector.broadcast %98 : vector<1x32xf32> to vector<8x32xf32>
    %100 = arith.addf %97, %99 : vector<8x32xf32>
    %c0_30 = arith.constant 0 : index
    %c0_31 = arith.constant 0 : index
    %c0_32 = arith.constant 0 : index
    %101 = vector.load %arg6[%c0_30, %c0_31, %c0_32] : memref<1x8x32xf32, #tpu.memory_space<vmem>>, vector<1x8x32xf32>
    %102 = vector.shape_cast %101 : vector<1x8x32xf32> to vector<8x32xf32>
    %103 = vector.shape_cast %100 : vector<8x32xf32> to vector<1x8x32xf32>
    tpu.vector_store %arg6[%c0_30, %c0_31, %c0_32], %103 {strides = array<i32>} : memref<1x8x32xf32, #tpu.memory_space<vmem>>, vector<1x8x32xf32>,
    return
  }
  func.func @transform_0(%arg0: i32, %arg1: i32) -> (i32, i32, i32) {
    %c0_i32 = arith.constant 0 : i32
    %c0_i32_0 = arith.constant 0 : i32
    %c0_i32_1 = arith.constant 0 : i32
    return %arg0, %c0_i32, %c0_i32_0 : i32, i32, i32
  }
  func.func @transform_1(%arg0: i32, %arg1: i32) -> (i32, i32) {
    %c0_i32 = arith.constant 0 : i32
    %c0_i32_0 = arith.constant 0 : i32
    %c0_i32_1 = arith.constant 0 : i32
    return %c0_i32, %c0_i32_0 : i32, i32
  }
  func.func @transform_2(%arg0: i32, %arg1: i32) -> (i32, i32) {
    %c0_i32 = arith.constant 0 : i32
    %c0_i32_0 = arith.constant 0 : i32
    %c0_i32_1 = arith.constant 0 : i32
    return %c0_i32, %c0_i32_0 : i32, i32
  }
  func.func @transform_3(%arg0: i32, %arg1: i32) -> (i32, i32) {
    %c0_i32 = arith.constant 0 : i32
    %c0_i32_0 = arith.constant 0 : i32
    %c0_i32_1 = arith.constant 0 : i32
    return %c0_i32, %c0_i32_0 : i32, i32
  }
  func.func @transform_4(%arg0: i32, %arg1: i32) -> (i32, i32, i32) {
    %c0_i32 = arith.constant 0 : i32
    %c0_i32_0 = arith.constant 0 : i32
    return %arg0, %arg1, %c0_i32 : i32, i32, i32
  }
}

</mosaic_0001>

<llo_original>
// kernel: tpu_custom_call.1
$region0: #{tpu_custom_call.1}
  #allocation0 [shape = 'u32[]', space=smem, size = 0x4, offset = 0x4, fixed_abs, tag = 'smem constant byte address 0x4 - core index']
  #allocation1 [shape = 'u32[144,128]{1,0:T(1,128)}', space=vmem, size = 0x12000, scoped, tag = 'internal scratch']
  %s0 = inlined_call_operand.hbm [shape: f32[2,8,32], index: 0, kind: input, shape index: {}]
  %s1 = inlined_call_operand.hbm [shape: f32[32,96], index: 1, kind: input, shape index: {}]
  %s2 = inlined_call_operand.hbm [shape: f32[32,32], index: 2, kind: input, shape index: {}]
  %s3 = inlined_call_operand.vmem [shape: f32[1,32], index: 3, kind: input, shape index: {}]
  %s4 = inlined_call_operand.hbm [shape: f32[2,8,32], index: 4, kind: output, shape index: {}]
  %s5 = sld [smem:[#allocation0]]
  $region61: #{tpu_custom_call.1} parent=0
    _
  %s7 = ssub.s32 1, %s5
  %s8 = scalar_select 0, %s7, %s5
  $region1: #{tpu_custom_call.1} parent=0
    #allocation2 [shape = 'u8[8192]{0}', space=vmem, size = 0x2000, scoped, tag = 'input window, operand 0']
    #allocation3 [shape = 's32[2]{0}', space=sflag, size = 0x8, scoped, tag = 'scoped memory for tpu_custom_call.1']
    #allocation4 [shape = 's32[2]{0}', space=sflag, size = 0x8, scoped, tag = 'scoped memory for tpu_custom_call.1']
    #allocation5 [shape = 'u8[16384]{0}', space=vmem, size = 0x4000, scoped, tag = 'input window, operand 1, single buffered']
    #allocation6 [shape = 's32[1]{0}', space=sflag, size = 0x4, scoped, tag = 'scoped memory for tpu_custom_call.1']
    #allocation7 [shape = 'u8[16384]{0}', space=vmem, size = 0x4000, scoped, tag = 'input window, operand 2, single buffered']
    #allocation8 [shape = 'u8[8192]{0}', space=vmem, size = 0x2000, scoped, tag = 'output window, operand 0']
    %9 = vsyncpa [#allocation3], 0
    %s10 = scalar_lea.sflag [#allocation3], 1
    %11 = vsyncpa %s10, 0
    %12 = vsyncpa [#allocation6], 0
    %13 = vsyncpa [#allocation4], 0
    %s14 = scalar_lea.sflag [#allocation4], 1
    %15 = vsyncpa %s14, 0
    loop: start=0, step=1, limit=4
    $region2: #{tpu_custom_call.1} parent=1 // loop_pre_header
      _
    $region3: #{tpu_custom_call.1} parent=1 // loop_header
      %s17 = sphi 0, %s21
      %p18 = scmp.ge.s32.totalorder %s17, 4
      %s24 = sphi 0, %s36
      %s25 = sphi 0, %s32
      %s26 = sphi 0, %s24
      %s27 = sphi 0, %s25
      %s28 = sphi 0, %s26
      %s29 = sphi 0, %s27
      %s39 = sphi 0, %s41
      %s42 = sphi 0, %s39
      %s43 = sphi 0, %s42
      %s59 = sphi 0, %s43
      %s63 = sphi 0, %s63
      %s65 = sphi 0, %s63
      %s66 = sphi 0, %s65
      %s80 = sphi 0, %s66
      %s84 = sphi 0, %s84
      %s86 = sphi 0, %s84
      %s87 = sphi 0, %s86
      %s101 = sphi 0, %s87
      %s105 = sphi 0, %s105
      %s107 = sphi 0, %s105
      %s108 = sphi 0, %s107
      %s122 = sphi 0, %s108
      %s130 = sphi 0, %s132
      %s133 = sphi 0, %s130
      %s134 = sphi 0, %s133
      %s150 = sphi 0, %s134
    $region4: #{tpu_custom_call.1} parent=1 // loop_header_branch
      %20 = sbr.rel (%p18) target = $region8
    $region5: #{tpu_custom_call.1} parent=1 // loop_body
      %s22 = ssub.s32 %s17, 1
      %s23 = ssub.s32 %s17, 2
      %s30 = sadd.s32 1, %s25
      %p31 = scmp.ge.s32.totalorder %s30, 1
      %s32 = scalar_select %p31, 0, %s30
      %s33 = sadd.s32 1, %s24
      %s34 = scalar_select %p31, %s33, %s24
      %p35 = scmp.ge.s32.totalorder %s34, 2
      %s36 = scalar_select %p35, 0, %s34
      %s37 = ssub.s32 %s24, %s36
      %p38 = scmp.eq.s32.totalorder %s37, 0
      %s40 = sadd.s32 %s39, 1
      %s41 = scalar_select %p38, %s39, %s40
      %p44 = pneg %p38
      %p45 = scmp.eq.s32.totalorder %s17, 1
      %p46 = por %p44, %p45
      %p47 = scmp.ne.s32.totalorder %s39, %s42
      %p48 = scmp.eq.s32.totalorder %s17, 0
      %p49 = por %p47, %p48
      %p50 = scmp.ne.s32.totalorder %s39, %s42
      %p51 = scmp.eq.s32.totalorder %s22, 1
      %p52 = por %p50, %p51
      %p53 = scmp.ne.s32.totalorder %s42, %s43
      %p54 = scmp.eq.s32.totalorder %s22, 0
      %p55 = por %p53, %p54
      %p56 = scmp.ne.s32.totalorder %s42, %s43
      %p57 = scmp.eq.s32.totalorder %s23, 1
      %p58 = por %p56, %p57
      %p60 = scmp.ne.s32.totalorder %s43, %s59
      %p61 = scmp.eq.s32.totalorder %s23, 0
      %p62 = por %p60, %p61
      %s64 = sadd.s32 %s63, 1
      %p67 = scmp.eq.s32.totalorder %s17, 1
      %p68 = scmp.ne.s32.totalorder %s63, %s65
      %p69 = scmp.eq.s32.totalorder %s17, 0
      %p70 = por %p68, %p69
      %p71 = scmp.ne.s32.totalorder %s63, %s65
      %p72 = scmp.eq.s32.totalorder %s22, 1
      %p73 = por %p71, %p72
      %p74 = scmp.ne.s32.totalorder %s65, %s66
      %p75 = scmp.eq.s32.totalorder %s22, 0
      %p76 = por %p74, %p75
      %p77 = scmp.ne.s32.totalorder %s65, %s66
      %p78 = scmp.eq.s32.totalorder %s23, 1
      %p79 = por %p77, %p78
      %p81 = scmp.ne.s32.totalorder %s66, %s80
      %p82 = scmp.eq.s32.totalorder %s23, 0
      %p83 = por %p81, %p82
      %s85 = sadd.s32 %s84, 1
      %p88 = scmp.eq.s32.totalorder %s17, 1
      %p89 = scmp.ne.s32.totalorder %s84, %s86
      %p90 = scmp.eq.s32.totalorder %s17, 0
      %p91 = por %p89, %p90
      %p92 = scmp.ne.s32.totalorder %s84, %s86
      %p93 = scmp.eq.s32.totalorder %s22, 1
      %p94 = por %p92, %p93
      %p95 = scmp.ne.s32.totalorder %s86, %s87
      %p96 = scmp.eq.s32.totalorder %s22, 0
      %p97 = por %p95, %p96
      %p98 = scmp.ne.s32.totalorder %s86, %s87
      %p99 = scmp.eq.s32.totalorder %s23, 1
      %p100 = por %p98, %p99
      %p102 = scmp.ne.s32.totalorder %s87, %s101
      %p103 = scmp.eq.s32.totalorder %s23, 0
      %p104 = por %p102, %p103
      %s106 = sadd.s32 %s105, 1
      %p109 = scmp.eq.s32.totalorder %s17, 1
      %p110 = scmp.ne.s32.totalorder %s105, %s107
      %p111 = scmp.eq.s32.totalorder %s17, 0
      %p112 = por %p110, %p111
      %p113 = scmp.ne.s32.totalorder %s105, %s107
      %p114 = scmp.eq.s32.totalorder %s22, 1
      %p115 = por %p113, %p114
      %p116 = scmp.ne.s32.totalorder %s107, %s108
      %p117 = scmp.eq.s32.totalorder %s22, 0
      %p118 = por %p116, %p117
      %p119 = scmp.ne.s32.totalorder %s107, %s108
      %p120 = scmp.eq.s32.totalorder %s23, 1
      %p121 = por %p119, %p120
      %p123 = scmp.ne.s32.totalorder %s108, %s122
      %p124 = scmp.eq.s32.totalorder %s23, 0
      %p125 = por %p123, %p124
      %s126 = ssub.s32 %s24, %s36
      %s127 = ssub.s32 %s25, %s32
      %s128 = sor.u32 %s126, %s127
      %p129 = scmp.eq.s32.totalorder %s128, 0
      %s131 = sadd.s32 %s130, 1
      %s132 = scalar_select %p129, %s130, %s131
      %p135 = pneg %p129
      %p136 = scmp.eq.s32.totalorder %s17, 1
      %p137 = por %p135, %p136
      %p138 = scmp.ne.s32.totalorder %s130, %s133
      %p139 = scmp.eq.s32.totalorder %s17, 0
      %p140 = por %p138, %p139
      %p141 = scmp.ne.s32.totalorder %s130, %s133
      %p142 = scmp.eq.s32.totalorder %s22, 1
      %p143 = por %p141, %p142
      %p144 = scmp.ne.s32.totalorder %s133, %s134
      %p145 = scmp.eq.s32.totalorder %s22, 0
      %p146 = por %p144, %p145
      %p147 = scmp.ne.s32.totalorder %s133, %s134
      %p148 = scmp.eq.s32.totalorder %s23, 1
      %p149 = por %p147, %p148
      %p151 = scmp.ne.s32.totalorder %s134, %s150
      %p152 = scmp.eq.s32.totalorder %s23, 0
      %p153 = por %p151, %p152
      %p154 = scmp.le.s32.totalorder 1, %s17
      %p155 = scmp.lt.s32.totalorder %s17, 3
      %p156 = pnand %p154, %p155
      %p157 = pneg %p156
      // Predicated region
      $region9: #{tpu_custom_call.1} parent=5 // pred_check
        _
      $region10: #{tpu_custom_call.1} parent=5 // pred_check_branch
        %159 = sbr.rel (%p156) target = $region12
      $region11: #{tpu_custom_call.1} parent=5 // pred_region
        %s160 = ssub.s32 %s17, 1
        // Predicated region
        $region13: #{tpu_custom_call.1} parent=11 // pred_check
          %p161 = pneg %p76
        $region14: #{tpu_custom_call.1} parent=11 // pred_check_branch
          %163 = sbr.rel (%p161) target = $region16
        $region15: #{tpu_custom_call.1} parent=11 // pred_region
          %s165 = ssub.s32 512, 512
          %166 = vsyncadd [#allocation6], %s165
          %s167 = sshll.u32 [#allocation5], 4
          %s168 = int_to_ptr.vmem [resolvable:$true] %s167
          %173 = dma.hbm_to_vmem [thread:$0]  %s1, 512, %s168, [#allocation6], 128, 128, 8
        $region16: #{tpu_custom_call.1} parent=11 // pred_fallthru
          _
        // Predicated region
        $region17: #{tpu_custom_call.1} parent=11 // pred_check
          %p174 = pneg %p97
        $region18: #{tpu_custom_call.1} parent=11 // pred_check_branch
          %176 = sbr.rel (%p174) target = $region20
        $region19: #{tpu_custom_call.1} parent=11 // pred_region
          %s178 = ssub.s32 512, 512
          %179 = vsyncadd [#allocation6], %s178
          %s180 = sshll.u32 [#allocation7], 4
          %s181 = int_to_ptr.vmem [resolvable:$true] %s180
          %186 = dma.hbm_to_vmem [thread:$0]  %s2, 512, %s181, [#allocation6], 128, 128, 8
        $region20: #{tpu_custom_call.1} parent=11 // pred_fallthru
          _
        // Predicated region
        $region21: #{tpu_custom_call.1} parent=11 // pred_check
          %p187 = pneg %p118
        $region22: #{tpu_custom_call.1} parent=11 // pred_check_branch
          %189 = sbr.rel (%p187) target = $region24
        $region23: #{tpu_custom_call.1} parent=11 // pred_region
          _
        $region24: #{tpu_custom_call.1} parent=11 // pred_fallthru
          _
      $region12: #{tpu_custom_call.1} parent=5 // pred_fallthru
        _
      %p190 = scmp.lt.s32.totalorder %s17, 2
      // Predicated region
      $region25: #{tpu_custom_call.1} parent=5 // pred_check
        %p191 = pneg %p190
      $region26: #{tpu_custom_call.1} parent=5 // pred_check_branch
        %193 = sbr.rel (%p191) target = $region28
      $region27: #{tpu_custom_call.1} parent=5 // pred_region
        // Predicated region
        $region29: #{tpu_custom_call.1} parent=27 // pred_check
          %p194 = pneg %p49
        $region30: #{tpu_custom_call.1} parent=27 // pred_check_branch
          %196 = sbr.rel (%p194) target = $region32
        $region31: #{tpu_custom_call.1} parent=27 // pred_region
          %s197 = sand.u32 %s39, 1
          %s198 = scalar_lea.sflag [#allocation3], %s197
          %s199 = sand.u32 %s39, 1
          %s200 = smul.addr %s199, 8
          %s201 = scalar_lea.vmem [#allocation2], %s200
          %s203 = ssub.s32 128, 128
          %204 = vsyncadd %s198, %s203
          %s205 = smul.addr %s24, 128
          %s206 = scalar_lea.hbm %s0, %s205
          %s208 = sshll.u32 %s201, 4
          %s209 = int_to_ptr.vmem [resolvable:$true] %s208
          %211 = dma.hbm_to_vmem [thread:$0]  %s206, 128, %s209, %s198
        $region32: #{tpu_custom_call.1} parent=27 // pred_fallthru
          _
      $region28: #{tpu_custom_call.1} parent=5 // pred_fallthru
        _
      %p212 = scmp.le.s32.totalorder 1, %s17
      %p213 = scmp.lt.s32.totalorder %s17, 3
      %p214 = pnand %p212, %p213
      %p215 = pneg %p214
      // Predicated region
      $region33: #{tpu_custom_call.1} parent=5 // pred_check
        _
      $region34: #{tpu_custom_call.1} parent=5 // pred_check_branch
        %217 = sbr.rel (%p214) target = $region36
      $region35: #{tpu_custom_call.1} parent=5 // pred_region
        %s218 = ssub.s32 %s17, 1
        %s219 = sand.u32 %s42, 1
        %s220 = scalar_lea.sflag [#allocation3], %s219
        %s221 = sand.u32 %s42, 1
        %s222 = smul.addr %s221, 8
        %s223 = scalar_lea.vmem [#allocation2], %s222
        // Predicated region
        $region37: #{tpu_custom_call.1} parent=35 // pred_check
          %p224 = pneg %p55
        $region38: #{tpu_custom_call.1} parent=35 // pred_check_branch
          %226 = sbr.rel (%p224) target = $region40
        $region39: #{tpu_custom_call.1} parent=35 // pred_region
          %227 = dma.done %s220, 128
        $region40: #{tpu_custom_call.1} parent=35 // pred_fallthru
          _
        // Predicated region
        $region41: #{tpu_custom_call.1} parent=35 // pred_check
          %p228 = pneg %p76
        $region42: #{tpu_custom_call.1} parent=35 // pred_check_branch
          %230 = sbr.rel (%p228) target = $region44
        $region43: #{tpu_custom_call.1} parent=35 // pred_region
          %231 = dma.done [#allocation6], 512
        $region44: #{tpu_custom_call.1} parent=35 // pred_fallthru
          _
        // Predicated region
        $region45: #{tpu_custom_call.1} parent=35 // pred_check
          %p232 = pneg %p97
        $region46: #{tpu_custom_call.1} parent=35 // pred_check_branch
          %234 = sbr.rel (%p232) target = $region48
        $region47: #{tpu_custom_call.1} parent=35 // pred_region
          %235 = dma.done [#allocation6], 512
        $region48: #{tpu_custom_call.1} parent=35 // pred_fallthru
          _
        %s236 = sand.u32 %s42, 1
        %s237 = scalar_lea.sflag [#allocation3], %s236
        %s238 = sand.u32 %s42, 1
        %s239 = smul.addr %s238, 8
        %s240 = scalar_lea.vmem [#allocation2], %s239
        %p241 = pneg %p55
        %p242 = pneg %p52
        %p243 = pneg %p76
        %p244 = pneg %p73
        %p245 = pneg %p97
        %p246 = pneg %p94
        %p247 = pneg %p118
        %p248 = pneg %p115
        %p249 = pneg %p146
        %p250 = pneg %p143
        %s251 = sand.u32 %s133, 1
        %s252 = scalar_lea.sflag [#allocation4], %s251
        %s253 = sand.u32 %s133, 1
        %s254 = smul.addr %s253, 8
        %s255 = scalar_lea.vmem [#allocation8], %s254
        %v257 = vld [vmem:[#allocation5] sm:$0xff]
        %v258 = vld [vmem:[#allocation5 + $0x8] sm:$0xff]
        %v259 = vld [vmem:[#allocation5 + $0x10] sm:$0xff]
        %v260 = vld [vmem:[#allocation5 + $0x18] sm:$0xff]
        %v261 = vpack.c.bf16 %v258, %v257
        %v262 = vpack.c.bf16 %v260, %v259
        %s263 = smul.u32 %s27, 8
        %v264 = vld [vmem:[%s223] sm:$0xff]
        %v265 = vpack.c.bf16 %v264, %v264
        %vm266 = vcmask 261120
        %v268 = vsel %vm266, %v265, 0
        %270 = vmatprep.subr.bf16.mxu0 0
        %271 = vmatpush1.bf16.msra.mxu0 %v261
        %272 = vmatprep.subr.bf16.mxu0 0
        %273 = vmatpush1.bf16.msra.mxu0 %v262
        %274 = vmatprep.subr.bf16.mxu0 0
        %275 = vmatpush1.bf16.msra.mxu0 0
        %276 = vmatprep.subr.bf16.mxu0 0
        %277 = vmatpush1.bf16.msra.mxu0 0
        %278 = vmatprep.subr.bf16.mxu0 0
        %279 = vmatpush1.bf16.msra.mxu0 0
        %280 = vmatprep.subr.bf16.mxu0 0
        %281 = vmatpush1.bf16.msra.mxu0 0
        %282 = vmatprep.subr.bf16.mxu0 0
        %283 = vmatpush1.bf16.msra.mxu0 0
        %284 = vmatprep.subr.bf16.mxu0 0
        %285 = vmatpush1.bf16.msra.mxu0 0
        %286 = vmatprep.subr.bf16.mxu0 0
        %287 = vmatpush1.bf16.msra.mxu0 0
        %288 = vmatprep.subr.bf16.mxu0 0
        %289 = vmatpush1.bf16.msra.mxu0 0
        %290 = vmatprep.subr.bf16.mxu0 0
        %291 = vmatpush1.bf16.msra.mxu0 0
        %292 = vmatprep.subr.bf16.mxu0 0
        %293 = vmatpush1.bf16.msra.mxu0 0
        %294 = vmatprep.subr.bf16.mxu0 0
        %295 = vmatpush1.bf16.msra.mxu0 0
        %296 = vmatprep.subr.bf16.mxu0 0
        %297 = vmatpush1.bf16.msra.mxu0 0
        %298 = vmatprep.subr.bf16.mxu0 0
        %299 = vmatpush1.bf16.msra.mxu0 0
        %300 = vmatprep.subr.bf16.mxu0 0
        %301 = vmatpush1.bf16.msra.mxu0 0
        %302 = vmatprep.mubr.bf16.mxu0 0
        %303 = vmatmul.mubr.bf16.gmra.mrb[0].mxu0 %v268
        %v304 = vpop.f32.mrb[0].mxu0
        %v305 = vadd.f32 0.0, %v304
        %v306 = vpop.f32.mrb[0].mxu0
        %v307 = vpop.f32.mrb[0].mxu0
        %v308 = vpop.f32.mrb[0].mxu0
        %309 = vdwg.mxu0
        %v310 = vmul.f32 %v305, 0.17677669
        %v311 = vpack.c.bf16 %v310, %v310
        %v312 = vpack.c.bf16 %v305, %v305
        %v313 = vlaneseq
        %v314 = vshrl.u32 %v313, 7
        %v315 = vstv %s263
        %v316 = vadd.s32 %v315, %v314
        %v317 = vlaneseq
        %v318 = vand.u32 %v317, 127
        %vm319 = vcmp.le.s32.totalorder %v318, %v316
        %321 = vrot.lane.b32.xlu0 %v312, 96
        %v322 = vpop.permute.xlu0 %321
        %vm323 = vcmask 64512
        %v325 = vsel %vm323, %v311, 0
        %v328 = vsel %vm323, %v322, 0
        %330 = vmatprep.subr.bf16.mxu0 0
        %331 = vmatpush1.bf16.xpose.msra.mxu0 %v328
        %332 = vmatprep.subr.bf16.mxu0 0
        %333 = vmatpush1.bf16.xpose.msra.mxu0 0
        %334 = vmatprep.subr.bf16.mxu0 0
        %335 = vmatpush1.bf16.xpose.msra.mxu0 0
        %336 = vmatprep.subr.bf16.mxu0 0
        %337 = vmatpush1.bf16.xpose.msra.mxu0 0
        %338 = vmatprep.subr.bf16.mxu0 0
        %339 = vmatpush1.bf16.xpose.msra.mxu0 0
        %340 = vmatprep.subr.bf16.mxu0 0
        %341 = vmatpush1.bf16.xpose.msra.mxu0 0
        %342 = vmatprep.subr.bf16.mxu0 0
        %343 = vmatpush1.bf16.xpose.msra.mxu0 0
        %344 = vmatprep.subr.bf16.mxu0 0
        %345 = vmatpush1.bf16.xpose.msra.mxu0 0
        %346 = vmatprep.subr.bf16.mxu0 0
        %347 = vmatpush1.bf16.xpose.msra.mxu0 0
        %348 = vmatprep.subr.bf16.mxu0 0
        %349 = vmatpush1.bf16.xpose.msra.mxu0 0
        %350 = vmatprep.subr.bf16.mxu0 0
        %351 = vmatpush1.bf16.xpose.msra.mxu0 0
        %352 = vmatprep.subr.bf16.mxu0 0
        %353 = vmatpush1.bf16.xpose.msra.mxu0 0
        %354 = vmatprep.subr.bf16.mxu0 0
        %355 = vmatpush1.bf16.xpose.msra.mxu0 0
        %356 = vmatprep.subr.bf16.mxu0 0
        %357 = vmatpush1.bf16.xpose.msra.mxu0 0
        %358 = vmatprep.subr.bf16.mxu0 0
        %359 = vmatpush1.bf16.xpose.msra.mxu0 0
        %360 = vmatprep.subr.bf16.mxu0 0
        %361 = vmatpush1.bf16.xpose.msra.mxu0 0
        %362 = vmatprep.mubr.bf16.mxu0 0
        %363 = vmatmul.mubr.bf16.gmra.mrb[0].mxu0 %v325
        %v364 = vpop.f32.mrb[0].mxu0
        %v365 = vadd.f32 0.0, %v364
        %v366 = vpop.f32.mrb[0].mxu0
        %v367 = vpop.f32.mrb[0].mxu0
        %v368 = vpop.f32.mrb[0].mxu0
        %369 = vdwg.mxu0
        %v370 = vsel %vm319, %v365, -inf
        %v371 = vsel %vm323, %v370, -inf
        %372 = vmax.xlane.f32.xlu0 %v371
        %v373 = vpop.xlane.xlu0 %372
        %v374 = vsub.f32 %v370, %v373
        %v375 = vmul.f32 %v374, 1.442695
        %v376 = vpow.pop %v375
        %v377 = vsel %vm323, %v376, 0.0
        %378 = vadd.xlane.f32.xlu0 %v377
        %v379 = vpop.xlane.xlu0 %378
        %v380 = vrcp.pop %v379
        %v381 = vmul.f32 %v376, %v380
        %v382 = vpack.c.bf16 %v381, %v381
        %383 = vrot.lane.b32.xlu0 %v312, 64
        %v384 = vpop.permute.xlu0 %383
        %v386 = vsel %vm323, %v382, 0
        %vm388 = vcmask 1043456
        %v390 = vsel %vm388, %v384, 0
        %392 = vmatprep.subr.bf16.mxu0 0
        %393 = vmatpush1.bf16.msra.mxu0 %v390
        %394 = vmatprep.subr.bf16.mxu0 0
        %395 = vmatpush1.bf16.msra.mxu0 0
        %396 = vmatprep.subr.bf16.mxu0 0
        %397 = vmatpush1.bf16.msra.mxu0 0
        %398 = vmatprep.subr.bf16.mxu0 0
        %399 = vmatpush1.bf16.msra.mxu0 0
        %400 = vmatprep.subr.bf16.mxu0 0
        %401 = vmatpush1.bf16.msra.mxu0 0
        %402 = vmatprep.subr.bf16.mxu0 0
        %403 = vmatpush1.bf16.msra.mxu0 0
        %404 = vmatprep.subr.bf16.mxu0 0
        %405 = vmatpush1.bf16.msra.mxu0 0
        %406 = vmatprep.subr.bf16.mxu0 0
        %407 = vmatpush1.bf16.msra.mxu0 0
        %408 = vmatprep.subr.bf16.mxu0 0
        %409 = vmatpush1.bf16.msra.mxu0 0
        %410 = vmatprep.subr.bf16.mxu0 0
        %411 = vmatpush1.bf16.msra.mxu0 0
        %412 = vmatprep.subr.bf16.mxu0 0
        %413 = vmatpush1.bf16.msra.mxu0 0
        %414 = vmatprep.subr.bf16.mxu0 0
        %415 = vmatpush1.bf16.msra.mxu0 0
        %416 = vmatprep.subr.bf16.mxu0 0
        %417 = vmatpush1.bf16.msra.mxu0 0
        %418 = vmatprep.subr.bf16.mxu0 0
        %419 = vmatpush1.bf16.msra.mxu0 0
        %420 = vmatprep.subr.bf16.mxu0 0
        %421 = vmatpush1.bf16.msra.mxu0 0
        %422 = vmatprep.subr.bf16.mxu0 0
        %423 = vmatpush1.bf16.msra.mxu0 0
        %424 = vmatprep.mubr.bf16.mxu0 0
        %425 = vmatmul.mubr.bf16.gmra.mrb[0].mxu0 %v386
        %v426 = vpop.f32.mrb[0].mxu0
        %v427 = vadd.f32 0.0, %v426
        %v428 = vpop.f32.mrb[0].mxu0
        %v429 = vpop.f32.mrb[0].mxu0
        %v430 = vpop.f32.mrb[0].mxu0
        %431 = vdwg.mxu0
        %433 = vrot.lane.b32.xlu0 %v311, 120
        %v434 = vpop.permute.xlu0 %433
        %435 = vrot.lane.b32.xlu0 %v312, 88
        %v436 = vpop.permute.xlu0 %435
        %v438 = vsel %vm323, %v434, 0
        %v441 = vsel %vm323, %v436, 0
        %443 = vmatprep.subr.bf16.mxu0 0
        %444 = vmatpush1.bf16.xpose.msra.mxu0 %v441
        %445 = vmatprep.subr.bf16.mxu0 0
        %446 = vmatpush1.bf16.xpose.msra.mxu0 0
        %447 = vmatprep.subr.bf16.mxu0 0
        %448 = vmatpush1.bf16.xpose.msra.mxu0 0
        %449 = vmatprep.subr.bf16.mxu0 0
        %450 = vmatpush1.bf16.xpose.msra.mxu0 0
        %451 = vmatprep.subr.bf16.mxu0 0
        %452 = vmatpush1.bf16.xpose.msra.mxu0 0
        %453 = vmatprep.subr.bf16.mxu0 0
        %454 = vmatpush1.bf16.xpose.msra.mxu0 0
        %455 = vmatprep.subr.bf16.mxu0 0
        %456 = vmatpush1.bf16.xpose.msra.mxu0 0
        %457 = vmatprep.subr.bf16.mxu0 0
        %458 = vmatpush1.bf16.xpose.msra.mxu0 0
        %459 = vmatprep.subr.bf16.mxu0 0
        %460 = vmatpush1.bf16.xpose.msra.mxu0 0
        %461 = vmatprep.subr.bf16.mxu0 0
        %462 = vmatpush1.bf16.xpose.msra.mxu0 0
        %463 = vmatprep.subr.bf16.mxu0 0
        %464 = vmatpush1.bf16.xpose.msra.mxu0 0
        %465 = vmatprep.subr.bf16.mxu0 0
        %466 = vmatpush1.bf16.xpose.msra.mxu0 0
        %467 = vmatprep.subr.bf16.mxu0 0
        %468 = vmatpush1.bf16.xpose.msra.mxu0 0
        %469 = vmatprep.subr.bf16.mxu0 0
        %470 = vmatpush1.bf16.xpose.msra.mxu0 0
        %471 = vmatprep.subr.bf16.mxu0 0
        %472 = vmatpush1.bf16.xpose.msra.mxu0 0
        %473 = vmatprep.subr.bf16.mxu0 0
        %474 = vmatpush1.bf16.xpose.msra.mxu0 0
        %475 = vmatprep.mubr.bf16.mxu0 0
        %476 = vmatmul.mubr.bf16.gmra.mrb[0].mxu0 %v438
        %v477 = vpop.f32.mrb[0].mxu0
        %v478 = vadd.f32 0.0, %v477
        %v479 = vpop.f32.mrb[0].mxu0
        %v480 = vpop.f32.mrb[0].mxu0
        %v481 = vpop.f32.mrb[0].mxu0
        %482 = vdwg.mxu0
        %v483 = vsel %vm319, %v478, -inf
        %v484 = vsel %vm323, %v483, -inf
        %485 = vmax.xlane.f32.xlu0 %v484
        %v486 = vpop.xlane.xlu0 %485
        %v487 = vsub.f32 %v483, %v486
        %v488 = vmul.f32 %v487, 1.442695
        %v489 = vpow.pop %v488
        %v490 = vsel %vm323, %v489, 0.0
        %491 = vadd.xlane.f32.xlu0 %v490
        %v492 = vpop.xlane.xlu0 %491
        %v493 = vrcp.pop %v492
        %v494 = vmul.f32 %v489, %v493
        %v495 = vpack.c.bf16 %v494, %v494
        %496 = vrot.lane.b32.xlu0 %v312, 56
        %v497 = vpop.permute.xlu0 %496
        %v499 = vsel %vm323, %v495, 0
        %v502 = vsel %vm388, %v497, 0
        %504 = vmatprep.subr.bf16.mxu0 0
        %505 = vmatpush1.bf16.msra.mxu0 %v502
        %506 = vmatprep.subr.bf16.mxu0 0
        %507 = vmatpush1.bf16.msra.mxu0 0
        %508 = vmatprep.subr.bf16.mxu0 0
        %509 = vmatpush1.bf16.msra.mxu0 0
        %510 = vmatprep.subr.bf16.mxu0 0
        %511 = vmatpush1.bf16.msra.mxu0 0
        %512 = vmatprep.subr.bf16.mxu0 0
        %513 = vmatpush1.bf16.msra.mxu0 0
        %514 = vmatprep.subr.bf16.mxu0 0
        %515 = vmatpush1.bf16.msra.mxu0 0
        %516 = vmatprep.subr.bf16.mxu0 0
        %517 = vmatpush1.bf16.msra.mxu0 0
        %518 = vmatprep.subr.bf16.mxu0 0
        %519 = vmatpush1.bf16.msra.mxu0 0
        %520 = vmatprep.subr.bf16.mxu0 0
        %521 = vmatpush1.bf16.msra.mxu0 0
        %522 = vmatprep.subr.bf16.mxu0 0
        %523 = vmatpush1.bf16.msra.mxu0 0
        %524 = vmatprep.subr.bf16.mxu0 0
        %525 = vmatpush1.bf16.msra.mxu0 0
        %526 = vmatprep.subr.bf16.mxu0 0
        %527 = vmatpush1.bf16.msra.mxu0 0
        %528 = vmatprep.subr.bf16.mxu0 0
        %529 = vmatpush1.bf16.msra.mxu0 0
        %530 = vmatprep.subr.bf16.mxu0 0
        %531 = vmatpush1.bf16.msra.mxu0 0
        %532 = vmatprep.subr.bf16.mxu0 0
        %533 = vmatpush1.bf16.msra.mxu0 0
        %534 = vmatprep.subr.bf16.mxu0 0
        %535 = vmatpush1.bf16.msra.mxu0 0
        %536 = vmatprep.mubr.bf16.mxu0 0
        %537 = vmatmul.mubr.bf16.gmra.mrb[0].mxu0 %v499
        %v538 = vpop.f32.mrb[0].mxu0
        %v539 = vadd.f32 0.0, %v538
        %v540 = vpop.f32.mrb[0].mxu0
        %v541 = vpop.f32.mrb[0].mxu0
        %v542 = vpop.f32.mrb[0].mxu0
        %543 = vdwg.mxu0
        %544 = vrot.lane.b32.xlu0 %v311, 112
        %v545 = vpop.permute.xlu0 %544
        %546 = vrot.lane.b32.xlu0 %v312, 80
        %v547 = vpop.permute.xlu0 %546
        %v549 = vsel %vm323, %v545, 0
        %v552 = vsel %vm323, %v547, 0
        %554 = vmatprep.subr.bf16.mxu0 0
        %555 = vmatpush1.bf16.xpose.msra.mxu0 %v552
        %556 = vmatprep.subr.bf16.mxu0 0
        %557 = vmatpush1.bf16.xpose.msra.mxu0 0
        %558 = vmatprep.subr.bf16.mxu0 0
        %559 = vmatpush1.bf16.xpose.msra.mxu0 0
        %560 = vmatprep.subr.bf16.mxu0 0
        %561 = vmatpush1.bf16.xpose.msra.mxu0 0
        %562 = vmatprep.subr.bf16.mxu0 0
        %563 = vmatpush1.bf16.xpose.msra.mxu0 0
        %564 = vmatprep.subr.bf16.mxu0 0
        %565 = vmatpush1.bf16.xpose.msra.mxu0 0
        %566 = vmatprep.subr.bf16.mxu0 0
        %567 = vmatpush1.bf16.xpose.msra.mxu0 0
        %568 = vmatprep.subr.bf16.mxu0 0
        %569 = vmatpush1.bf16.xpose.msra.mxu0 0
        %570 = vmatprep.subr.bf16.mxu0 0
        %571 = vmatpush1.bf16.xpose.msra.mxu0 0
        %572 = vmatprep.subr.bf16.mxu0 0
        %573 = vmatpush1.bf16.xpose.msra.mxu0 0
        %574 = vmatprep.subr.bf16.mxu0 0
        %575 = vmatpush1.bf16.xpose.msra.mxu0 0
        %576 = vmatprep.subr.bf16.mxu0 0
        %577 = vmatpush1.bf16.xpose.msra.mxu0 0
        %578 = vmatprep.subr.bf16.mxu0 0
        %579 = vmatpush1.bf16.xpose.msra.mxu0 0
        %580 = vmatprep.subr.bf16.mxu0 0
        %581 = vmatpush1.bf16.xpose.msra.mxu0 0
        %582 = vmatprep.subr.bf16.mxu0 0
        %583 = vmatpush1.bf16.xpose.msra.mxu0 0
        %584 = vmatprep.subr.bf16.mxu0 0
        %585 = vmatpush1.bf16.xpose.msra.mxu0 0
        %586 = vmatprep.mubr.bf16.mxu0 0
        %587 = vmatmul.mubr.bf16.gmra.mrb[0].mxu0 %v549
        %v588 = vpop.f32.mrb[0].mxu0
        %v589 = vadd.f32 0.0, %v588
        %v590 = vpop.f32.mrb[0].mxu0
        %v591 = vpop.f32.mrb[0].mxu0
        %v592 = vpop.f32.mrb[0].mxu0
        %593 = vdwg.mxu0
        %v594 = vsel %vm319, %v589, -inf
        %v595 = vsel %vm323, %v594, -inf
        %596 = vmax.xlane.f32.xlu0 %v595
        %v597 = vpop.xlane.xlu0 %596
        %v598 = vsub.f32 %v594, %v597
        %v599 = vmul.f32 %v598, 1.442695
        %v600 = vpow.pop %v599
        %v601 = vsel %vm323, %v600, 0.0
        %602 = vadd.xlane.f32.xlu0 %v601
        %v603 = vpop.xlane.xlu0 %602
        %v604 = vrcp.pop %v603
        %v605 = vmul.f32 %v600, %v604
        %v606 = vpack.c.bf16 %v605, %v605
        %607 = vrot.lane.b32.xlu0 %v312, 48
        %v608 = vpop.permute.xlu0 %607
        %v610 = vsel %vm323, %v606, 0
        %v613 = vsel %vm388, %v608, 0
        %615 = vmatprep.subr.bf16.mxu0 0
        %616 = vmatpush1.bf16.msra.mxu0 %v613
        %617 = vmatprep.subr.bf16.mxu0 0
        %618 = vmatpush1.bf16.msra.mxu0 0
        %619 = vmatprep.subr.bf16.mxu0 0
        %620 = vmatpush1.bf16.msra.mxu0 0
        %621 = vmatprep.subr.bf16.mxu0 0
        %622 = vmatpush1.bf16.msra.mxu0 0
        %623 = vmatprep.subr.bf16.mxu0 0
        %624 = vmatpush1.bf16.msra.mxu0 0
        %625 = vmatprep.subr.bf16.mxu0 0
        %626 = vmatpush1.bf16.msra.mxu0 0
        %627 = vmatprep.subr.bf16.mxu0 0
        %628 = vmatpush1.bf16.msra.mxu0 0
        %629 = vmatprep.subr.bf16.mxu0 0
        %630 = vmatpush1.bf16.msra.mxu0 0
        %631 = vmatprep.subr.bf16.mxu0 0
        %632 = vmatpush1.bf16.msra.mxu0 0
        %633 = vmatprep.subr.bf16.mxu0 0
        %634 = vmatpush1.bf16.msra.mxu0 0
        %635 = vmatprep.subr.bf16.mxu0 0
        %636 = vmatpush1.bf16.msra.mxu0 0
        %637 = vmatprep.subr.bf16.mxu0 0
        %638 = vmatpush1.bf16.msra.mxu0 0
        %639 = vmatprep.subr.bf16.mxu0 0
        %640 = vmatpush1.bf16.msra.mxu0 0
        %641 = vmatprep.subr.bf16.mxu0 0
        %642 = vmatpush1.bf16.msra.mxu0 0
        %643 = vmatprep.subr.bf16.mxu0 0
        %644 = vmatpush1.bf16.msra.mxu0 0
        %645 = vmatprep.subr.bf16.mxu0 0
        %646 = vmatpush1.bf16.msra.mxu0 0
        %647 = vmatprep.mubr.bf16.mxu0 0
        %648 = vmatmul.mubr.bf16.gmra.mrb[0].mxu0 %v610
        %v649 = vpop.f32.mrb[0].mxu0
        %v650 = vadd.f32 0.0, %v649
        %v651 = vpop.f32.mrb[0].mxu0
        %v652 = vpop.f32.mrb[0].mxu0
        %v653 = vpop.f32.mrb[0].mxu0
        %654 = vdwg.mxu0
        %655 = vrot.lane.b32.xlu0 %v311, 104
        %v656 = vpop.permute.xlu0 %655
        %657 = vrot.lane.b32.xlu0 %v312, 72
        %v658 = vpop.permute.xlu0 %657
        %v660 = vsel %vm323, %v656, 0
        %v663 = vsel %vm323, %v658, 0
        %665 = vmatprep.subr.bf16.mxu0 0
        %666 = vmatpush1.bf16.xpose.msra.mxu0 %v663
        %667 = vmatprep.subr.bf16.mxu0 0
        %668 = vmatpush1.bf16.xpose.msra.mxu0 0
        %669 = vmatprep.subr.bf16.mxu0 0
        %670 = vmatpush1.bf16.xpose.msra.mxu0 0
        %671 = vmatprep.subr.bf16.mxu0 0
        %672 = vmatpush1.bf16.xpose.msra.mxu0 0
        %673 = vmatprep.subr.bf16.mxu0 0
        %674 = vmatpush1.bf16.xpose.msra.mxu0 0
        %675 = vmatprep.subr.bf16.mxu0 0
        %676 = vmatpush1.bf16.xpose.msra.mxu0 0
        %677 = vmatprep.subr.bf16.mxu0 0
        %678 = vmatpush1.bf16.xpose.msra.mxu0 0
        %679 = vmatprep.subr.bf16.mxu0 0
        %680 = vmatpush1.bf16.xpose.msra.mxu0 0
        %681 = vmatprep.subr.bf16.mxu0 0
        %682 = vmatpush1.bf16.xpose.msra.mxu0 0
        %683 = vmatprep.subr.bf16.mxu0 0
        %684 = vmatpush1.bf16.xpose.msra.mxu0 0
        %685 = vmatprep.subr.bf16.mxu0 0
        %686 = vmatpush1.bf16.xpose.msra.mxu0 0
        %687 = vmatprep.subr.bf16.mxu0 0
        %688 = vmatpush1.bf16.xpose.msra.mxu0 0
        %689 = vmatprep.subr.bf16.mxu0 0
        %690 = vmatpush1.bf16.xpose.msra.mxu0 0
        %691 = vmatprep.subr.bf16.mxu0 0
        %692 = vmatpush1.bf16.xpose.msra.mxu0 0
        %693 = vmatprep.subr.bf16.mxu0 0
        %694 = vmatpush1.bf16.xpose.msra.mxu0 0
        %695 = vmatprep.subr.bf16.mxu0 0
        %696 = vmatpush1.bf16.xpose.msra.mxu0 0
        %697 = vmatprep.mubr.bf16.mxu0 0
        %698 = vmatmul.mubr.bf16.gmra.mrb[0].mxu0 %v660
        %v699 = vpop.f32.mrb[0].mxu0
        %v700 = vadd.f32 0.0, %v699
        %v701 = vpop.f32.mrb[0].mxu0
        %v702 = vpop.f32.mrb[0].mxu0
        %v703 = vpop.f32.mrb[0].mxu0
        %704 = vdwg.mxu0
        %v705 = vsel %vm319, %v700, -inf
        %v706 = vsel %vm323, %v705, -inf
        %707 = vmax.xlane.f32.xlu0 %v706
        %v708 = vpop.xlane.xlu0 %707
        %v709 = vsub.f32 %v705, %v708
        %v710 = vmul.f32 %v709, 1.442695
        %v711 = vpow.pop %v710
        %v712 = vsel %vm323, %v711, 0.0
        %713 = vadd.xlane.f32.xlu0 %v712
        %v714 = vpop.xlane.xlu0 %713
        %v715 = vrcp.pop %v714
        %v716 = vmul.f32 %v711, %v715
        %v717 = vpack.c.bf16 %v716, %v716
        %718 = vrot.lane.b32.xlu0 %v312, 40
        %v719 = vpop.permute.xlu0 %718
        %v721 = vsel %vm323, %v717, 0
        %v724 = vsel %vm388, %v719, 0
        %726 = vmatprep.subr.bf16.mxu0 0
        %727 = vmatpush1.bf16.msra.mxu0 %v724
        %728 = vmatprep.subr.bf16.mxu0 0
        %729 = vmatpush1.bf16.msra.mxu0 0
        %730 = vmatprep.subr.bf16.mxu0 0
        %731 = vmatpush1.bf16.msra.mxu0 0
        %732 = vmatprep.subr.bf16.mxu0 0
        %733 = vmatpush1.bf16.msra.mxu0 0
        %734 = vmatprep.subr.bf16.mxu0 0
        %735 = vmatpush1.bf16.msra.mxu0 0
        %736 = vmatprep.subr.bf16.mxu0 0
        %737 = vmatpush1.bf16.msra.mxu0 0
        %738 = vmatprep.subr.bf16.mxu0 0
        %739 = vmatpush1.bf16.msra.mxu0 0
        %740 = vmatprep.subr.bf16.mxu0 0
        %741 = vmatpush1.bf16.msra.mxu0 0
        %742 = vmatprep.subr.bf16.mxu0 0
        %743 = vmatpush1.bf16.msra.mxu0 0
        %744 = vmatprep.subr.bf16.mxu0 0
        %745 = vmatpush1.bf16.msra.mxu0 0
        %746 = vmatprep.subr.bf16.mxu0 0
        %747 = vmatpush1.bf16.msra.mxu0 0
        %748 = vmatprep.subr.bf16.mxu0 0
        %749 = vmatpush1.bf16.msra.mxu0 0
        %750 = vmatprep.subr.bf16.mxu0 0
        %751 = vmatpush1.bf16.msra.mxu0 0
        %752 = vmatprep.subr.bf16.mxu0 0
        %753 = vmatpush1.bf16.msra.mxu0 0
        %754 = vmatprep.subr.bf16.mxu0 0
        %755 = vmatpush1.bf16.msra.mxu0 0
        %756 = vmatprep.subr.bf16.mxu0 0
        %757 = vmatpush1.bf16.msra.mxu0 0
        %758 = vmatprep.mubr.bf16.mxu0 0
        %759 = vmatmul.mubr.bf16.gmra.mrb[0].mxu0 %v721
        %v760 = vpop.f32.mrb[0].mxu0
        %v761 = vadd.f32 0.0, %v760
        %v762 = vpop.f32.mrb[0].mxu0
        %v763 = vpop.f32.mrb[0].mxu0
        %v764 = vpop.f32.mrb[0].mxu0
        %765 = vdwg.mxu0
        %767 = vrot.lane.b32.xlu0 %v539, 8
        %v768 = vpop.permute.xlu0 %767
        %771 = vrot.lane.b32.xlu0 %v650, 16
        %v772 = vpop.permute.xlu0 %771
        %775 = vrot.lane.b32.xlu0 %v761, 24
        %v776 = vpop.permute.xlu0 %775
        %v778 = vsel %vm323, %v427, %v768
        %vm779 = vcmask 130048
        %v780 = vsel %vm779, %v778, %v772
        %vm781 = vcmask 195584
        %v782 = vsel %vm781, %v780, %v776
        %v783 = vld [vmem:[#allocation7] sm:$0xff]
        %v784 = vld [vmem:[#allocation7 + $0x8] sm:$0xff]
        %v785 = vld [vmem:[#allocation7 + $0x10] sm:$0xff]
        %v786 = vld [vmem:[#allocation7 + $0x18] sm:$0xff]
        %v787 = vpack.c.bf16 %v784, %v783
        %v788 = vpack.c.bf16 %v786, %v785
        %v789 = vpack.c.bf16 %v782, %v782
        %v790 = vld [vmem:[%s3] sm:$0x1]
        %v792 = vlaneseq
        %v793 = vshrl.u32 %v792, 7
        %v794 = vsub.s32 0, %v793
        %v795 = vrot.slane %v790, %v794
        %v798 = vsel %vm266, %v789, 0
        %800 = vmatprep.subr.bf16.mxu0 0
        %801 = vmatpush1.bf16.msra.mxu0 %v787
        %802 = vmatprep.subr.bf16.mxu0 0
        %803 = vmatpush1.bf16.msra.mxu0 %v788
        %804 = vmatprep.subr.bf16.mxu0 0
        %805 = vmatpush1.bf16.msra.mxu0 0
        %806 = vmatprep.subr.bf16.mxu0 0
        %807 = vmatpush1.bf16.msra.mxu0 0
        %808 = vmatprep.subr.bf16.mxu0 0
        %809 = vmatpush1.bf16.msra.mxu0 0
        %810 = vmatprep.subr.bf16.mxu0 0
        %811 = vmatpush1.bf16.msra.mxu0 0
        %812 = vmatprep.subr.bf16.mxu0 0
        %813 = vmatpush1.bf16.msra.mxu0 0
        %814 = vmatprep.subr.bf16.mxu0 0
        %815 = vmatpush1.bf16.msra.mxu0 0
        %816 = vmatprep.subr.bf16.mxu0 0
        %817 = vmatpush1.bf16.msra.mxu0 0
        %818 = vmatprep.subr.bf16.mxu0 0
        %819 = vmatpush1.bf16.msra.mxu0 0
        %820 = vmatprep.subr.bf16.mxu0 0
        %821 = vmatpush1.bf16.msra.mxu0 0
        %822 = vmatprep.subr.bf16.mxu0 0
        %823 = vmatpush1.bf16.msra.mxu0 0
        %824 = vmatprep.subr.bf16.mxu0 0
        %825 = vmatpush1.bf16.msra.mxu0 0
        %826 = vmatprep.subr.bf16.mxu0 0
        %827 = vmatpush1.bf16.msra.mxu0 0
        %828 = vmatprep.subr.bf16.mxu0 0
        %829 = vmatpush1.bf16.msra.mxu0 0
        %830 = vmatprep.subr.bf16.mxu0 0
        %831 = vmatpush1.bf16.msra.mxu0 0
        %832 = vmatprep.mubr.bf16.mxu0 0
        %833 = vmatmul.mubr.bf16.gmra.mrb[0].mxu0 %v798
        %v834 = vpop.f32.mrb[0].mxu0
        %v835 = vadd.f32 %v795, %v834
        %v836 = vpop.f32.mrb[0].mxu0
        %v837 = vpop.f32.mrb[0].mxu0
        %v838 = vpop.f32.mrb[0].mxu0
        %839 = vdwg.mxu0
        %840 = vst.msk [vmem:[%s255] sm:$0xff] %vm266, %v835
        %s841 = sand.u32 %s133, 1
        %s842 = scalar_lea.sflag [#allocation4], %s841
        %s843 = sand.u32 %s133, 1
        %s844 = smul.addr %s843, 8
        %s845 = scalar_lea.vmem [#allocation8], %s844
        // Predicated region
        $region49: #{tpu_custom_call.1} parent=35 // pred_check
          %p846 = pneg %p143
        $region50: #{tpu_custom_call.1} parent=35 // pred_check_branch
          %848 = sbr.rel (%p846) target = $region52
        $region51: #{tpu_custom_call.1} parent=35 // pred_region
          %s850 = ssub.s32 128, 128
          %851 = vsyncadd %s842, %s850
          %s852 = sadd.s32 %s27, %s26
          %s853 = smul.addr %s852, 128
          %s854 = scalar_lea.hbm %s4, %s853
          %s856 = sshll.u32 %s845, 4
          %s857 = int_to_ptr.vmem [resolvable:$true] %s856
          %859 = dma.vmem_to_hbm [thread:$0]  %s857, 128, %s854, %s842
        $region52: #{tpu_custom_call.1} parent=35 // pred_fallthru
          _
      $region36: #{tpu_custom_call.1} parent=5 // pred_fallthru
        _
      %p860 = scmp.le.s32.totalorder 2, %s17
      // Predicated region
      $region53: #{tpu_custom_call.1} parent=5 // pred_check
        %p861 = pneg %p860
      $region54: #{tpu_custom_call.1} parent=5 // pred_check_branch
        %863 = sbr.rel (%p861) target = $region56
      $region55: #{tpu_custom_call.1} parent=5 // pred_region
        %s864 = ssub.s32 %s17, 2
        // Predicated region
        $region57: #{tpu_custom_call.1} parent=55 // pred_check
          %p865 = pneg %p149
        $region58: #{tpu_custom_call.1} parent=55 // pred_check_branch
          %867 = sbr.rel (%p865) target = $region60
        $region59: #{tpu_custom_call.1} parent=55 // pred_region
          %s868 = sand.u32 %s134, 1
          %s869 = scalar_lea.sflag [#allocation4], %s868
          %s870 = sand.u32 %s134, 1
          %s871 = smul.addr %s870, 8
          %s872 = scalar_lea.vmem [#allocation8], %s871
          %873 = dma.done %s869, 128
        $region60: #{tpu_custom_call.1} parent=55 // pred_fallthru
          _
      $region56: #{tpu_custom_call.1} parent=5 // pred_fallthru
        _
    $region6: #{tpu_custom_call.1} parent=1 // loop_footer
      %s21 = sadd.s32 1, %s17
    $region7: #{tpu_custom_call.1} parent=1 // loop_footer_branch
      %16 = sbr.rel target = $region3
    $region8: #{tpu_custom_call.1} parent=1 // loop_exit
      _
    %874 = vsyncpa [#allocation3], 1
    %s875 = scalar_lea.sflag [#allocation3], 1
    %876 = vsyncpa %s875, 1
    %877 = vsyncpa [#allocation6], 1
    %878 = vsyncpa [#allocation4], 1
    %s879 = scalar_lea.sflag [#allocation4], 1
    %880 = vsyncpa %s879, 1

</llo_original>
